<compile_context>
chip_gen: v5e
topology: v5e:2x2
jax: 0.10.0
libtpu: 0.0.40
codegen_flags: <defaults>
</compile_context>

<pallas_src>
import jax
import jax.numpy as jnp
from jax.experimental import pallas as pl
from jax.experimental.pallas import tpu as pltpu


_VMEM_LIMIT = 32 * 1024 * 1024  # > v5e 16 MiB scoped default, <= v7x 64 MiB physical


# ---------------------------------------------------------------------------
# Kernel bodies
# ---------------------------------------------------------------------------
def fused_kernel(x_ref, w_ref, adj_ref, b_ref, o_ref, s_ref):
    """Small-graph path (one launch). support = x @ W is computed once into a VMEM
    scratch on the first (sequential) grid step and reused for every adj row block."""

    @pl.when(pl.program_id(0) == 0)
    def _support():
        s_ref[...] = jnp.dot(
            x_ref[...], w_ref[...], preferred_element_type=jnp.float32
        ).astype(s_ref.dtype)

    out = jnp.dot(adj_ref[...], s_ref[...], preferred_element_type=jnp.float32)
    o_ref[...] = (out + b_ref[...]).astype(o_ref.dtype)


def support_kernel(x_ref, w_ref, s_ref, acc_ref):
    """support row tile = sum_k x[i, k] @ W[k]   (K-tiled over F_in, f32 accumulation)."""
    k = pl.program_id(1)

    @pl.when(k == 0)
    def _init():
        acc_ref[...] = jnp.zeros_like(acc_ref)

    acc_ref[...] += jnp.dot(x_ref[...], w_ref[...], preferred_element_type=jnp.float32)

    @pl.when(k == pl.num_programs(1) - 1)
    def _finalize():
        s_ref[...] = acc_ref[...].astype(s_ref.dtype)


def aggregate_kernel(adj_ref, s_ref, b_ref, o_ref, acc_ref):
    """out row tile = sum_k adj[i, k] @ support[k]  (+ bias at finalize).

    `s_ref` is either a streamed (tk, F_out) block (index map selects block k), or the
    whole VMEM-resident support matrix (constant index map -> DMA'd only once); in the
    resident case the k-th row block is sliced out locally."""
    k = pl.program_id(1)
    tk = adj_ref.shape[1]

    @pl.when(k == 0)
    def _init():
        acc_ref[...] = jnp.zeros_like(acc_ref)

    if s_ref.shape[0] == tk:                       # streamed block
        s_blk = s_ref[...]
    else:                                          # resident: slice the k-th row block
        start = pl.multiple_of(k * tk, tk)
        s_blk = s_ref[pl.ds(start, tk), :]
    acc_ref[...] += jnp.dot(adj_ref[...], s_blk, preferred_element_type=jnp.float32)

    @pl.when(k == pl.num_programs(1) - 1)
    def _finalize():
        o_ref[...] = (acc_ref[...] + b_ref[...]).astype(o_ref.dtype)


def aggregate_sparse_kernel(kidx_ref, counts_ref, adj_ref, s_ref, b_ref, o_ref, acc_ref):
    """Block-sparse aggregation: k runs over the scalar-prefetched list of NONZERO adj
    blocks of row block i.  Steps past counts[i] repeat the previous block index (their
    DMA is elided) and the matmul is skipped."""
    i = pl.program_id(0)
    k = pl.program_id(1)
    tk = adj_ref.shape[1]

    @pl.when(k == 0)
    def _init():
        acc_ref[...] = jnp.zeros_like(acc_ref)

    @pl.when(k < counts_ref[i])
    def _accumulate():
        if s_ref.shape[0] == tk:                   # streamed (selected via index_map)
            s_blk = s_ref[...]
        else:                                      # resident: slice the nonzero row block
            start = pl.multiple_of(kidx_ref[i, k] * tk, tk)
            s_blk = s_ref[pl.ds(start, tk), :]
        acc_ref[...] += jnp.dot(adj_ref[...], s_blk, preferred_element_type=jnp.float32)

    @pl.when(k == pl.num_programs(1) - 1)
    def _finalize():
        o_ref[...] = (acc_ref[...] + b_ref[...]).astype(o_ref.dtype)


# ---------------------------------------------------------------------------
# Wrapper helpers
# ---------------------------------------------------------------------------
def _round_up(v, m):
    return ((v + m - 1) // m) * m


def _pad2(a, rows, cols):
    return jnp.pad(a, ((0, rows - a.shape[0]), (0, cols - a.shape[1])))


def _concrete_int(v, fallback):
    """int(v) when v is a concrete array; (fallback, False) under jit/vmap tracing."""
    try:
        return int(v), True
    except Exception:
        return fallback, False


def _compiler_params(semantics):
    return pltpu.CompilerParams(
        dimension_semantics=semantics, vmem_limit_bytes=_VMEM_LIMIT
    )


# ---------------------------------------------------------------------------
# Public wrapper
# ---------------------------------------------------------------------------
def graph_convolution(x, weight, adj, bias=None, *, out_dtype=None,
                      compute_dtype=jnp.bfloat16, path=None,
                      vmem_budget_bytes=28 * 1024 * 1024):
    """GCN layer forward: adj @ (x @ weight) + bias.

    x: [N, F_in], weight: [F_in, F_out], adj: [N, N] dense, bias: [F_out] or None.
    compute_dtype: matmul operand dtype (bf16 default, f32 MXU accumulation; use
                   jnp.float32 for closer parity with the PyTorch f32 path).
    out_dtype:     output dtype (defaults to x.dtype; bf16 halves the HBM writeback).
    path:          None (auto) | "fused" | "dense" | "sparse".
    """
    if path not in (None, "fused", "dense", "sparse"):
        raise ValueError(f"unknown path {path!r}")
    n, f_in = x.shape
    f_out = weight.shape[1]
    if out_dtype is None:
        out_dtype = x.dtype
    cdt = jnp.dtype(compute_dtype)
    odt = jnp.dtype(out_dtype)
    f_out_pad = _round_up(f_out, 128)

    # Bias row (zeros when bias is None -> identical semantics, one tiny constant block).
    b_row = jnp.zeros((1, f_out_pad), jnp.float32)
    if bias is not None:
        b_row = b_row.at[0, :f_out].set(bias.astype(jnp.float32))

    # ------------------ fused single-kernel path for small graphs ------------------
    n_pad_f = _round_up(n, 128)
    f_in_pad_f = _round_up(f_in, 128)
    tm_f = min(n_pad_f, 128)
    fused_bytes = (2 * n_pad_f * f_in_pad_f * cdt.itemsize      # x (fetched once)
                   + 2 * f_in_pad_f * f_out_pad * cdt.itemsize  # W
                   + 2 * tm_f * n_pad_f * cdt.itemsize          # adj row blocks
                   + n_pad_f * f_out_pad * cdt.itemsize         # support scratch
                   + 2 * tm_f * f_out_pad * odt.itemsize        # out blocks
                   + 2 * f_out_pad * 4)                         # bias
    use_fused = (path == "fused") or (
        path is None and n_pad_f <= 1024 and fused_bytes <= 16 * 1024 * 1024)

    if use_fused:
        x_p = _pad2(x, n_pad_f, f_in_pad_f).astype(cdt)
        w_p = _pad2(weight, f_in_pad_f, f_out_pad).astype(cdt)
        adj_p = _pad2(adj, n_pad_f, n_pad_f).astype(cdt)
        out_p = pl.pallas_call(
            fused_kernel,
            out_shape=jax.ShapeDtypeStruct((n_pad_f, f_out_pad), odt),
            grid_spec=pltpu.PrefetchScalarGridSpec(
                num_scalar_prefetch=0,
                grid=(n_pad_f // tm_f,),
                in_specs=[
                    pl.BlockSpec((n_pad_f, f_in_pad_f), lambda i: (0, 0)),
                    pl.BlockSpec((f_in_pad_f, f_out_pad), lambda i: (0, 0)),
                    pl.BlockSpec((tm_f, n_pad_f), lambda i: (i, 0)),
                    pl.BlockSpec((1, f_out_pad), lambda i: (0, 0)),
                ],
                out_specs=pl.BlockSpec((tm_f, f_out_pad), lambda i: (i, 0)),
                scratch_shapes=[pltpu.VMEM((n_pad_f, f_out_pad), cdt)],
            ),
            # "arbitrary": the support scratch is filled on step 0 and must stay visible
            # to every later step (scratch is per-core, so no megacore sharding here;
            # launch overhead dominates at these sizes anyway).
            compiler_params=_compiler_params(("arbitrary",)),
        )(x_p, w_p, adj_p, b_row)
        return out_p[:n, :f_out]

    # ------------------------------ two-stage path ---------------------------------
    # Aggregation tiles (stage 2): 512 blocks amortize the ~0.35 us per-grid-step
    # overhead (≈85% of HBM roofline vs ≈63% at 256); small graphs keep 128/256.
    if n >= 2048:
        t = 512
    elif n >= 512:
        t = 256
    else:
        t = 128
    tm, tk = t, t
    n_pad = _round_up(n, max(tm, tk))
    while n_pad // tm < 2 and tm > 128:        # >= 2 row blocks so both v7x TCs get work
        tm //= 2

    # Support tiles (stage 1): stream the weight in <=512-row chunks (K-tiling over
    # F_in) so a wide layer never double-buffers the whole weight matrix in VMEM.
    if f_in > 512:
        f_in_pad = _round_up(f_in, 512)
        tkf = 512
    else:
        f_in_pad = _round_up(f_in, 128)
        tkf = f_in_pad
    tm_s = tm
    while tm_s > 128 and tm_s * f_out_pad * 4 > 8 * 1024 * 1024:  # bound f32 acc scratch
        tm_s //= 2
    # TODO(synk): also tile F_out (j-grid) for extremely wide output layers.

    x_p = _pad2(x, n_pad, f_in_pad).astype(cdt)
    w_p = _pad2(weight, f_in_pad, f_out_pad).astype(cdt)
    adj_p = _pad2(adj, n_pad, n_pad).astype(cdt)

    # --- stage 1: support = x @ W ---
    support = pl.pallas_call(
        support_kernel,
        out_shape=jax.ShapeDtypeStruct((n_pad, f_out_pad), cdt),
        grid_spec=pltpu.PrefetchScalarGridSpec(
            num_scalar_prefetch=0,
            grid=(n_pad // tm_s, f_in_pad // tkf),
            in_specs=[
                pl.BlockSpec((tm_s, tkf), lambda i, k: (i, k)),
                pl.BlockSpec((tkf, f_out_pad), lambda i, k: (k, 0)),
            ],
            out_specs=pl.BlockSpec((tm_s, f_out_pad), lambda i, k: (i, 0)),
            scratch_shapes=[pltpu.VMEM((tm_s, f_out_pad), jnp.float32)],
        ),
        compiler_params=_compiler_params(("parallel", "arbitrary")),
    )(x_p, w_p)

    # --- stage 2: out = adj @ support (+ bias) ---
    nR, nK = n_pad // tm, n_pad // tk

    # Keep support VMEM-resident (constant index map -> fetched once) whenever the
    # double-buffered slab + adj/out blocks + f32 accumulator fit the budget.
    resident_bytes = (2 * n_pad * f_out_pad * cdt.itemsize       # support (2 buffers)
                      + 2 * tm * tk * cdt.itemsize               # adj blocks
                      + 2 * tm * f_out_pad * odt.itemsize        # out blocks
                      + tm * f_out_pad * 4                       # f32 accumulator
                      + 2 * f_out_pad * 4)                       # bias
    resident = resident_bytes <= vmem_budget_bytes

    # Block-sparse schedule: which k blocks of adj row block i are nonzero.
    use_sparse = False
    counts = kidx = None
    kmax = nK
    if path == "sparse" or (path is None and nK > 1):
        blk_nz = jnp.any(adj_p.reshape(nR, tm, nK, tk) != 0, axis=(1, 3))  # [nR, nK]
        counts = jnp.sum(blk_nz, axis=1).astype(jnp.int32)                 # [nR]
        n_zero_blocks, concrete = _concrete_int(jnp.sum(jnp.logical_not(blk_nz)), 0)
        if path == "sparse":
            use_sparse = True
        else:
            # Auto: only if adj is concrete (not traced) and >=25% of blocks are zero.
            use_sparse = concrete and 4 * n_zero_blocks >= nR * nK
        if use_sparse:
            order = jnp.argsort(jnp.where(blk_nz, 0, 1).astype(jnp.int32), axis=1)
            order = order.astype(jnp.int32)            # nonzero block columns first (stable)
            iota = jnp.arange(nK, dtype=jnp.int32)[None, :]
            last = jnp.take_along_axis(order, jnp.maximum(counts - 1, 0)[:, None], axis=1)
            last = jnp.where(counts[:, None] > 0, last, 0)
            # Pad each row's k-list with its last valid index: padded steps re-read the
            # same block (DMA elided) and the matmul is pl.when-gated off.
            kidx = jnp.where(iota < counts[:, None], order, last).astype(jnp.int32)
            kmax, _ = _concrete_int(jnp.max(counts), nK)  # static grid bound if concrete
            kmax = max(1, min(kmax, nK))

    cparams = _compiler_params(("parallel", "arbitrary"))
    scratch = [pltpu.VMEM((tm, f_out_pad), jnp.float32)]

    if use_sparse:
        if resident:
            s_spec = pl.BlockSpec((n_pad, f_out_pad), lambda i, k, ki, cn: (0, 0))
        else:
            s_spec = pl.BlockSpec((tk, f_out_pad), lambda i, k, ki, cn: (ki[i, k], 0))
        out_p = pl.pallas_call(
            aggregate_sparse_kernel,
            out_shape=jax.ShapeDtypeStruct((n_pad, f_out_pad), odt),
            grid_spec=pltpu.PrefetchScalarGridSpec(
                num_scalar_prefetch=2,
                grid=(nR, kmax),
                in_specs=[
                    pl.BlockSpec((tm, tk), lambda i, k, ki, cn: (i, ki[i, k])),
                    s_spec,
                    pl.BlockSpec((1, f_out_pad), lambda i, k, ki, cn: (0, 0)),
                ],
                out_specs=pl.BlockSpec((tm, f_out_pad), lambda i, k, ki, cn: (i, 0)),
                scratch_shapes=scratch,
            ),
            compiler_params=cparams,
        )(kidx, counts, adj_p, support, b_row)
    else:
        if resident:
            s_spec = pl.BlockSpec((n_pad, f_out_pad), lambda i, k: (0, 0))
        else:
            s_spec = pl.BlockSpec((tk, f_out_pad), lambda i, k: (k, 0))
        out_p = pl.pallas_call(
            aggregate_kernel,
            out_shape=jax.ShapeDtypeStruct((n_pad, f_out_pad), odt),
            grid_spec=pltpu.PrefetchScalarGridSpec(
                num_scalar_prefetch=0,
                grid=(nR, nK),
                in_specs=[
                    pl.BlockSpec((tm, tk), lambda i, k: (i, k)),
                    s_spec,
                    pl.BlockSpec((1, f_out_pad), lambda i, k: (0, 0)),
                ],
                out_specs=pl.BlockSpec((tm, f_out_pad), lambda i, k: (i, 0)),
                scratch_shapes=scratch,
            ),
            compiler_params=cparams,
        )(adj_p, support, b_row)

    # Slice away zero-padded rows / feature columns.
    return out_p[:n, :f_out]


# ---------------------------------------------------------------------------
# Self-check
# ---------------------------------------------------------------------------
if __name__ == "__main__":
    def reference(x, w, adj, bias):
        # Matches the kernel's bf16 operand rounding; accumulation stays f32.
        xb = x.astype(jnp.bfloat16).astype(jnp.float32)
        ab = adj.astype(jnp.bfloat16).astype(jnp.float32)
        wb = w.astype(jnp.bfloat16).astype(jnp.float32)
        support = (xb @ wb).astype(jnp.bfloat16).astype(jnp.float32)
        out = ab @ support
        return out + bias if bias is not None else out

    key = jax.random.PRNGKey(0)
    k_x, k_adj, k_w, k_mask = jax.random.split(key, 4)

    # --- small graph: fused single-kernel path -------------------------------------
    N, F_IN, F_OUT = 64, 32, 16
    x = jax.random.normal(k_x, (N, F_IN), dtype=jnp.float32)
    adj_dense = jax.random.uniform(k_adj, (N, N), dtype=jnp.float32)
    adj = jnp.where(adj_dense > 0.8, adj_dense, 0.0)
    std = (2.0 / (F_IN + F_OUT)) ** 0.5        # xavier-normal std
    weight = std * jax.random.normal(k_w, (F_IN, F_OUT), dtype=jnp.float32)
    bias = jnp.zeros((F_OUT,), dtype=jnp.float32)   # bias.data.fill_(0.0)

    out = graph_convolution(x, weight, adj, bias)
    jax.block_until_ready(out)
    assert out.shape == (N, F_OUT)
    assert jnp.allclose(out, reference(x, weight, adj, bias), atol=2e-3, rtol=2e-3)

    out_nb = graph_convolution(x, weight, adj, None)
    jax.block_until_ready(out_nb)
    assert jnp.allclose(out_nb, reference(x, weight, adj, None), atol=2e-3, rtol=2e-3)

    # --- larger graph: exercise the two-stage paths --------------------------------
    N2, F_IN2, F_OUT2 = 384, 96, 48
    k_x2, k_adj2, k_w2 = jax.random.split(jax.random.PRNGKey(1), 3)
    x2 = jax.random.normal(k_x2, (N2, F_IN2), dtype=jnp.float32)
    w2 = (2.0 / (F_IN2 + F_OUT2)) ** 0.5 * jax.random.normal(
        k_w2, (F_IN2, F_OUT2), dtype=jnp.float32)
    b2 = 0.1 * jnp.ones((F_OUT2,), dtype=jnp.float32)
    a2 = jax.random.uniform(k_adj2, (N2, N2), dtype=jnp.float32)
    a2 = jnp.where(a2 > 0.9, a2, 0.0)
    # Make the adjacency block-sparse at 128x128 granularity.
    blk_mask = (jax.random.uniform(k_mask, (3, 3)) > 0.6).astype(jnp.float32)
    a2 = a2 * jnp.repeat(jnp.repeat(blk_mask, 128, axis=0), 128, axis=1)
    ref2 = reference(x2, w2, a2, b2)
    tol = dict(atol=5e-3, rtol=5e-3)

    out_dense = graph_convolution(x2, w2, a2, b2, path="dense")       # resident support
    jax.block_until_ready(out_dense)
    assert jnp.allclose(out_dense, ref2, **tol)

    out_stream = graph_convolution(x2, w2, a2, b2, path="dense",
                                   vmem_budget_bytes=0)               # streamed support
    jax.block_until_ready(out_stream)
    assert jnp.allclose(out_stream, ref2, **tol)

    out_sparse = graph_convolution(x2, w2, a2, b2, path="sparse")     # block-sparse, resident
    jax.block_until_ready(out_sparse)
    assert jnp.allclose(out_sparse, ref2, **tol)

    out_sparse_s = graph_convolution(x2, w2, a2, b2, path="sparse",
                                     vmem_budget_bytes=0)             # block-sparse, streamed
    jax.block_until_ready(out_sparse_s)
    assert jnp.allclose(out_sparse_s, ref2, **tol)

    print("KERNEL_OK")
</pallas_src>

<mosaic_0001>
module attributes {stable_mosaic.version = 11 : i64} {
  func.func @fused_kernel(%arg0: i32, %arg1: memref<128x128xbf16, #tpu.memory_space<vmem>>, %arg2: memref<128x128xbf16, #tpu.memory_space<vmem>>, %arg3: memref<128x128xbf16, #tpu.memory_space<vmem>>, %arg4: memref<1x128xf32, #tpu.memory_space<vmem>>, %arg5: memref<128x128xf32, #tpu.memory_space<vmem>>, %arg6: memref<128x128xbf16, #tpu.memory_space<vmem>>) attributes {dimension_semantics = [#tpu.dimension_semantics<arbitrary>], iteration_bounds = array<i64: 1>, scalar_prefetch = 0 : i64, scratch_operands = 1 : i64, tpu.core_type = #tpu.core_type<tc>, window_params = [{pipeline_mode = #tpu.pipeline_mode<synchronous>, transform_indices = @transform_0, window_bounds = array<i64: 128, 128>}, {pipeline_mode = #tpu.pipeline_mode<synchronous>, transform_indices = @transform_1, window_bounds = array<i64: 128, 128>}, {transform_indices = @transform_2, window_bounds = array<i64: 128, 128>}, {pipeline_mode = #tpu.pipeline_mode<synchronous>, transform_indices = @transform_3, window_bounds = array<i64: 1, 128>}, {transform_indices = @transform_4, window_bounds = array<i64: 128, 128>}]} {
    %c0_i32 = arith.constant 0 : i32
    %0 = arith.cmpi eq, %arg0, %c0_i32 : i32
    %1 = arith.extui %0 : i1 to i32
    %c0_i32_0 = arith.constant 0 : i32
    %2 = arith.cmpi ne, %1, %c0_i32_0 : i32
    scf.if %2 {
      %c0_8 = arith.constant 0 : index
      %c0_9 = arith.constant 0 : index
      %10 = vector.load %arg1[%c0_8, %c0_9] : memref<128x128xbf16, #tpu.memory_space<vmem>>, vector<128x128xbf16>
      %c0_10 = arith.constant 0 : index
      %c0_11 = arith.constant 0 : index
      %11 = vector.load %arg2[%c0_10, %c0_11] : memref<128x128xbf16, #tpu.memory_space<vmem>>, vector<128x128xbf16>
      %cst_12 = arith.constant dense<0.000000e+00> : vector<128x128xf32>
      %12 = tpu.matmul %10, %11, %cst_12 {dimension_numbers = #tpu.dot_dimension_numbers<[1], [0], [0], [1], [0, 0, 1, 1], [], []>} : vector<128x128xbf16>, vector<128x128xbf16>, vector<128x128xf32> -> vector<128x128xf32>
      %13 = arith.truncf %12 : vector<128x128xf32> to vector<128x128xbf16>
      %c0_13 = arith.constant 0 : index
      %c0_14 = arith.constant 0 : index
      %14 = vector.load %arg6[%c0_13, %c0_14] : memref<128x128xbf16, #tpu.memory_space<vmem>>, vector<128x128xbf16>
      tpu.vector_store %arg6[%c0_13, %c0_14], %13 {strides = array<i32>} : memref<128x128xbf16, #tpu.memory_space<vmem>>, vector<128x128xbf16>,
    } else {
    }
    %c0 = arith.constant 0 : index
    %c0_1 = arith.constant 0 : index
    %3 = vector.load %arg3[%c0, %c0_1] : memref<128x128xbf16, #tpu.memory_space<vmem>>, vector<128x128xbf16>
    %c0_2 = arith.constant 0 : index
    %c0_3 = arith.constant 0 : index
    %4 = vector.load %arg6[%c0_2, %c0_3] : memref<128x128xbf16, #tpu.memory_space<vmem>>, vector<128x128xbf16>
    %cst = arith.constant dense<0.000000e+00> : vector<128x128xf32>
    %5 = tpu.matmul %3, %4, %cst {dimension_numbers = #tpu.dot_dimension_numbers<[1], [0], [0], [1], [0, 0, 1, 1], [], []>} : vector<128x128xbf16>, vector<128x128xbf16>, vector<128x128xf32> -> vector<128x128xf32>
    %c0_4 = arith.constant 0 : index
    %c0_5 = arith.constant 0 : index
    %6 = vector.load %arg4[%c0_4, %c0_5] : memref<1x128xf32, #tpu.memory_space<vmem>>, vector<1x128xf32>
    %7 = vector.broadcast %6 : vector<1x128xf32> to vector<128x128xf32>
    %8 = arith.addf %5, %7 : vector<128x128xf32>
    %c0_6 = arith.constant 0 : index
    %c0_7 = arith.constant 0 : index
    %9 = vector.load %arg5[%c0_6, %c0_7] : memref<128x128xf32, #tpu.memory_space<vmem>>, vector<128x128xf32>
    tpu.vector_store %arg5[%c0_6, %c0_7], %8 {strides = array<i32>} : memref<128x128xf32, #tpu.memory_space<vmem>>, vector<128x128xf32>,
    return
  }
  func.func @transform_0(%arg0: i32) -> (i32, i32) {
    %c0_i32 = arith.constant 0 : i32
    %c0_i32_0 = arith.constant 0 : i32
    %c0_i32_1 = arith.constant 0 : i32
    return %c0_i32, %c0_i32_0 : i32, i32
  }
  func.func @transform_1(%arg0: i32) -> (i32, i32) {
    %c0_i32 = arith.constant 0 : i32
    %c0_i32_0 = arith.constant 0 : i32
    %c0_i32_1 = arith.constant 0 : i32
    return %c0_i32, %c0_i32_0 : i32, i32
  }
  func.func @transform_2(%arg0: i32) -> (i32, i32) {
    %c0_i32 = arith.constant 0 : i32
    %c0_i32_0 = arith.constant 0 : i32
    return %arg0, %c0_i32 : i32, i32
  }
  func.func @transform_3(%arg0: i32) -> (i32, i32) {
    %c0_i32 = arith.constant 0 : i32
    %c0_i32_0 = arith.constant 0 : i32
    %c0_i32_1 = arith.constant 0 : i32
    return %c0_i32, %c0_i32_0 : i32, i32
  }
  func.func @transform_4(%arg0: i32) -> (i32, i32) {
    %c0_i32 = arith.constant 0 : i32
    %c0_i32_0 = arith.constant 0 : i32
    return %arg0, %c0_i32 : i32, i32
  }
}

</mosaic_0001>

<llo_original>
// kernel: tpu_custom_call.1
$region0: #{tpu_custom_call.1}
  #allocation0 [shape = 'u32[]', space=smem, size = 0x4, offset = 0x4, fixed_abs, tag = 'smem constant byte address 0x4 - core index']
  #allocation1 [shape = 'u32[72,128]{1,0:T(1,128)}', space=vmem, size = 0x9000, scoped, tag = 'internal scratch']
  #allocation2 [shape = 'bf16[128,128]{1,0:T(8,128)(2,1)}', space=vmem, size = 0x8000, scoped, tag = 'scratch operand']
  %s0 = inlined_call_operand.hbm [shape: bf16[128,128], index: 0, kind: input, shape index: {}]
  %s1 = inlined_call_operand.hbm [shape: bf16[128,128], index: 1, kind: input, shape index: {}]
  %s2 = inlined_call_operand.hbm [shape: bf16[128,128], index: 2, kind: input, shape index: {}]
  %s3 = inlined_call_operand.vmem [shape: f32[1,128], index: 3, kind: input, shape index: {}]
  %s4 = inlined_call_operand.hbm [shape: f32[128,128], index: 4, kind: output, shape index: {}]
  %s5 = sld [smem:[#allocation0]]
  $region42: #{tpu_custom_call.1} parent=0
    _
  %s7 = ssub.s32 1, %s5
  %s8 = scalar_select 0, %s7, %s5
  $region1: #{tpu_custom_call.1} parent=0
    #allocation3 [shape = 'u8[32768]{0}', space=vmem, size = 0x8000, scoped, tag = 'input window, operand 0, single buffered']
    #allocation4 [shape = 's32[1]{0}', space=sflag, size = 0x4, scoped, tag = 'scoped memory for tpu_custom_call.1']
    #allocation5 [shape = 's32[1]{0}', space=sflag, size = 0x4, scoped, tag = 'scoped memory for tpu_custom_call.1']
    #allocation6 [shape = 'u8[32768]{0}', space=vmem, size = 0x8000, scoped, tag = 'input window, operand 1, single buffered']
    #allocation7 [shape = 's32[1]{0}', space=sflag, size = 0x4, scoped, tag = 'scoped memory for tpu_custom_call.1']
    #allocation8 [shape = 'u8[32768]{0}', space=vmem, size = 0x8000, scoped, tag = 'input window, operand 2, single buffered']
    #allocation9 [shape = 'u8[65536]{0}', space=vmem, size = 0x10000, scoped, tag = 'output window, operand 0, single buffered']
    %9 = vsyncpa [#allocation4], 0
    %10 = vsyncpa [#allocation7], 0
    %11 = vsyncpa [#allocation5], 0
    // Predicated region
    $region2: #{tpu_custom_call.1} parent=1 // pred_check
      _
    $region3: #{tpu_custom_call.1} parent=1 // pred_check_branch
      %13 = sbr.rel (0) target = $region5
    $region4: #{tpu_custom_call.1} parent=1 // pred_region
      %15 = vsyncadd [#allocation4], 0
      %s16 = sshll.u32 %s0, 4
      %s17 = int_to_ptr.hbm [resolvable:$true] %s16
      %s18 = sshll.u32 [#allocation3], 4
      %s19 = int_to_ptr.vmem [resolvable:$true] %s18
      %24 = dma.hbm_to_vmem [thread:$0]  %s17, 1024, %s19, [#allocation4], 64, 64, 4
    $region5: #{tpu_custom_call.1} parent=1 // pred_fallthru
      _
    // Predicated region
    $region6: #{tpu_custom_call.1} parent=1 // pred_check
      _
    $region7: #{tpu_custom_call.1} parent=1 // pred_check_branch
      %26 = sbr.rel (0) target = $region9
    $region8: #{tpu_custom_call.1} parent=1 // pred_region
      %28 = vsyncadd [#allocation7], 0
      %s29 = sshll.u32 %s1, 4
      %s30 = int_to_ptr.hbm [resolvable:$true] %s29
      %s31 = sshll.u32 [#allocation6], 4
      %s32 = int_to_ptr.vmem [resolvable:$true] %s31
      %37 = dma.hbm_to_vmem [thread:$0]  %s30, 1024, %s32, [#allocation7], 64, 64, 4
    $region9: #{tpu_custom_call.1} parent=1 // pred_fallthru
      _
    // Predicated region
    $region10: #{tpu_custom_call.1} parent=1 // pred_check
      _
    $region11: #{tpu_custom_call.1} parent=1 // pred_check_branch
      %39 = sbr.rel (0) target = $region13
    $region12: #{tpu_custom_call.1} parent=1 // pred_region
      %41 = vsyncadd [#allocation7], 0
      %s42 = sshll.u32 %s2, 4
      %s43 = int_to_ptr.hbm [resolvable:$true] %s42
      %s44 = sshll.u32 [#allocation8], 4
      %s45 = int_to_ptr.vmem [resolvable:$true] %s44
      %50 = dma.hbm_to_vmem [thread:$0]  %s43, 1024, %s45, [#allocation7], 64, 64, 4
    $region13: #{tpu_custom_call.1} parent=1 // pred_fallthru
      _
    // Predicated region
    $region14: #{tpu_custom_call.1} parent=1 // pred_check
      _
    $region15: #{tpu_custom_call.1} parent=1 // pred_check_branch
      %52 = sbr.rel (0) target = $region17
    $region16: #{tpu_custom_call.1} parent=1 // pred_region
      _
    $region17: #{tpu_custom_call.1} parent=1 // pred_fallthru
      _
    // Predicated region
    $region18: #{tpu_custom_call.1} parent=1 // pred_check
      _
    $region19: #{tpu_custom_call.1} parent=1 // pred_check_branch
      %54 = sbr.rel (0) target = $region21
    $region20: #{tpu_custom_call.1} parent=1 // pred_region
      %56 = dma.done [#allocation4], 1024
    $region21: #{tpu_custom_call.1} parent=1 // pred_fallthru
      _
    // Predicated region
    $region22: #{tpu_custom_call.1} parent=1 // pred_check
      _
    $region23: #{tpu_custom_call.1} parent=1 // pred_check_branch
      %58 = sbr.rel (0) target = $region25
    $region24: #{tpu_custom_call.1} parent=1 // pred_region
      %60 = dma.done [#allocation7], 1024
    $region25: #{tpu_custom_call.1} parent=1 // pred_fallthru
      _
    // Predicated region
    $region26: #{tpu_custom_call.1} parent=1 // pred_check
      _
    $region27: #{tpu_custom_call.1} parent=1 // pred_check_branch
      %62 = sbr.rel (0) target = $region29
    $region28: #{tpu_custom_call.1} parent=1 // pred_region
      %64 = dma.done [#allocation7], 1024
    $region29: #{tpu_custom_call.1} parent=1 // pred_fallthru
      _
    %p65 = scmp.eq.s32.totalorder 0, 0
    // Predicated region
    $region30: #{tpu_custom_call.1} parent=1 // pred_check
      %p66 = pneg %p65
    $region31: #{tpu_custom_call.1} parent=1 // pred_check_branch
      %68 = sbr.rel (%p66) target = $region33
    $region32: #{tpu_custom_call.1} parent=1 // pred_region
      %v69 = vld [vmem:[#allocation3] sm:$0xf]
      %v70 = vld [vmem:[#allocation3 + $0x4] sm:$0xf]
      %v71 = vld [vmem:[#allocation3 + $0x8] sm:$0xf]
      %v72 = vld [vmem:[#allocation3 + $0xc] sm:$0xf]
      %v73 = vld [vmem:[#allocation3 + $0x10] sm:$0xf]
      %v74 = vld [vmem:[#allocation3 + $0x14] sm:$0xf]
      %v75 = vld [vmem:[#allocation3 + $0x18] sm:$0xf]
      %v76 = vld [vmem:[#allocation3 + $0x1c] sm:$0xf]
      %v77 = vld [vmem:[#allocation3 + $0x20] sm:$0xf]
      %v78 = vld [vmem:[#allocation3 + $0x24] sm:$0xf]
      %v79 = vld [vmem:[#allocation3 + $0x28] sm:$0xf]
      %v80 = vld [vmem:[#allocation3 + $0x2c] sm:$0xf]
      %v81 = vld [vmem:[#allocation3 + $0x30] sm:$0xf]
      %v82 = vld [vmem:[#allocation3 + $0x34] sm:$0xf]
      %v83 = vld [vmem:[#allocation3 + $0x38] sm:$0xf]
      %v84 = vld [vmem:[#allocation3 + $0x3c] sm:$0xf]
      %v85 = vld [vmem:[#allocation6] sm:$0xf]
      %v86 = vld [vmem:[#allocation6 + $0x4] sm:$0xf]
      %v87 = vld [vmem:[#allocation6 + $0x8] sm:$0xf]
      %v88 = vld [vmem:[#allocation6 + $0xc] sm:$0xf]
      %v89 = vld [vmem:[#allocation6 + $0x10] sm:$0xf]
      %v90 = vld [vmem:[#allocation6 + $0x14] sm:$0xf]
      %v91 = vld [vmem:[#allocation6 + $0x18] sm:$0xf]
      %v92 = vld [vmem:[#allocation6 + $0x1c] sm:$0xf]
      %v93 = vld [vmem:[#allocation6 + $0x20] sm:$0xf]
      %v94 = vld [vmem:[#allocation6 + $0x24] sm:$0xf]
      %v95 = vld [vmem:[#allocation6 + $0x28] sm:$0xf]
      %v96 = vld [vmem:[#allocation6 + $0x2c] sm:$0xf]
      %v97 = vld [vmem:[#allocation6 + $0x30] sm:$0xf]
      %v98 = vld [vmem:[#allocation6 + $0x34] sm:$0xf]
      %v99 = vld [vmem:[#allocation6 + $0x38] sm:$0xf]
      %v100 = vld [vmem:[#allocation6 + $0x3c] sm:$0xf]
      %v117 = vunpack.c.l.b16 %v69
      %v118 = vunpack.c.l.b16 %v70
      %v119 = vunpack.c.l.b16 %v71
      %v120 = vunpack.c.l.b16 %v72
      %v121 = vunpack.c.l.b16 %v73
      %v122 = vunpack.c.l.b16 %v74
      %v123 = vunpack.c.l.b16 %v75
      %v124 = vunpack.c.l.b16 %v76
      %v125 = vunpack.c.l.b16 %v77
      %v126 = vunpack.c.l.b16 %v78
      %v127 = vunpack.c.l.b16 %v79
      %v128 = vunpack.c.l.b16 %v80
      %v129 = vunpack.c.l.b16 %v81
      %v130 = vunpack.c.l.b16 %v82
      %v131 = vunpack.c.l.b16 %v83
      %v132 = vunpack.c.l.b16 %v84
      %v133 = vpack.c.b16 %v118, %v117
      %v134 = vpack.c.b16 %v120, %v119
      %v135 = vpack.c.b16 %v122, %v121
      %v136 = vpack.c.b16 %v124, %v123
      %v137 = vpack.c.b16 %v126, %v125
      %v138 = vpack.c.b16 %v128, %v127
      %v139 = vpack.c.b16 %v130, %v129
      %v140 = vpack.c.b16 %v132, %v131
      %v165 = vunpack.c.l.b16 %v85
      %v166 = vunpack.c.l.b16 %v86
      %v167 = vunpack.c.l.b16 %v87
      %v168 = vunpack.c.l.b16 %v88
      %v169 = vunpack.c.l.b16 %v89
      %v170 = vunpack.c.l.b16 %v90
      %v171 = vunpack.c.l.b16 %v91
      %v172 = vunpack.c.l.b16 %v92
      %v173 = vunpack.c.l.b16 %v93
      %v174 = vunpack.c.l.b16 %v94
      %v175 = vunpack.c.l.b16 %v95
      %v176 = vunpack.c.l.b16 %v96
      %v177 = vunpack.c.l.b16 %v97
      %v178 = vunpack.c.l.b16 %v98
      %v179 = vunpack.c.l.b16 %v99
      %v180 = vunpack.c.l.b16 %v100
      %v181 = vpack.c.b16 %v166, %v165
      %v182 = vpack.c.b16 %v168, %v167
      %v183 = vpack.c.b16 %v170, %v169
      %v184 = vpack.c.b16 %v172, %v171
      %v185 = vpack.c.b16 %v174, %v173
      %v186 = vpack.c.b16 %v176, %v175
      %v187 = vpack.c.b16 %v178, %v177
      %v188 = vpack.c.b16 %v180, %v179
      %197 = vmatpush.bf16.msra.mxu0 %v188
      %198 = vmatpush.bf16.msra.mxu0 %v187
      %199 = vmatpush.bf16.msra.mxu0 %v186
      %200 = vmatpush.bf16.msra.mxu0 %v185
      %201 = vmatpush.bf16.msra.mxu0 %v184
      %202 = vmatpush.bf16.msra.mxu0 %v183
      %203 = vmatpush.bf16.msra.mxu0 %v182
      %204 = vmatpush.bf16.msra.mxu0 %v181
      %205 = vmatmul.bf16.gmra.mxu0 %v133
      %v206 = vpop.f32.mrf.mxu0
      %v207 = vadd.f32 0.0, %v206
      %v208 = vpop.f32.mrf.mxu0
      %v209 = vadd.f32 0.0, %v208
      %210 = vmatmul.bf16.gmra.mxu0 %v134
      %v211 = vpop.f32.mrf.mxu0
      %v212 = vadd.f32 0.0, %v211
      %v213 = vpop.f32.mrf.mxu0
      %v214 = vadd.f32 0.0, %v213
      %215 = vmatmul.bf16.gmra.mxu0 %v135
      %v216 = vpop.f32.mrf.mxu0
      %v217 = vadd.f32 0.0, %v216
      %v218 = vpop.f32.mrf.mxu0
      %v219 = vadd.f32 0.0, %v218
      %220 = vmatmul.bf16.gmra.mxu0 %v136
      %v221 = vpop.f32.mrf.mxu0
      %v222 = vadd.f32 0.0, %v221
      %v223 = vpop.f32.mrf.mxu0
      %v224 = vadd.f32 0.0, %v223
      %225 = vmatmul.bf16.gmra.mxu0 %v137
      %v226 = vpop.f32.mrf.mxu0
      %v227 = vadd.f32 0.0, %v226
      %v228 = vpop.f32.mrf.mxu0
      %v229 = vadd.f32 0.0, %v228
      %230 = vmatmul.bf16.gmra.mxu0 %v138
      %v231 = vpop.f32.mrf.mxu0
      %v232 = vadd.f32 0.0, %v231
      %v233 = vpop.f32.mrf.mxu0
      %v234 = vadd.f32 0.0, %v233
      %235 = vmatmul.bf16.gmra.mxu0 %v139
      %v236 = vpop.f32.mrf.mxu0
      %v237 = vadd.f32 0.0, %v236
      %v238 = vpop.f32.mrf.mxu0
      %v239 = vadd.f32 0.0, %v238
      %240 = vmatmul.bf16.gmra.mxu0 %v140
      %v241 = vpop.f32.mrf.mxu0
      %v242 = vadd.f32 0.0, %v241
      %v243 = vpop.f32.mrf.mxu0
      %v244 = vadd.f32 0.0, %v243
      %245 = vdwg.mxu0
      %v246 = vpack.c.bf16 %v207, %v207
      %v247 = vpack.c.bf16 %v209, %v209
      %v248 = vpack.c.bf16 %v212, %v212
      %v249 = vpack.c.bf16 %v214, %v214
      %v250 = vpack.c.bf16 %v217, %v217
      %v251 = vpack.c.bf16 %v219, %v219
      %v252 = vpack.c.bf16 %v222, %v222
      %v253 = vpack.c.bf16 %v224, %v224
      %v254 = vpack.c.bf16 %v227, %v227
      %v255 = vpack.c.bf16 %v229, %v229
      %v256 = vpack.c.bf16 %v232, %v232
      %v257 = vpack.c.bf16 %v234, %v234
      %v258 = vpack.c.bf16 %v237, %v237
      %v259 = vpack.c.bf16 %v239, %v239
      %v260 = vpack.c.bf16 %v242, %v242
      %v261 = vpack.c.bf16 %v244, %v244
      %262 = vst [vmem:[#allocation2] sm:$0xf] %v246
      %263 = vst [vmem:[#allocation2 + $0x4] sm:$0xf] %v247
      %264 = vst [vmem:[#allocation2 + $0x8] sm:$0xf] %v248
      %265 = vst [vmem:[#allocation2 + $0xc] sm:$0xf] %v249
      %266 = vst [vmem:[#allocation2 + $0x10] sm:$0xf] %v250
      %267 = vst [vmem:[#allocation2 + $0x14] sm:$0xf] %v251
      %268 = vst [vmem:[#allocation2 + $0x18] sm:$0xf] %v252
      %269 = vst [vmem:[#allocation2 + $0x1c] sm:$0xf] %v253
      %270 = vst [vmem:[#allocation2 + $0x20] sm:$0xf] %v254
      %271 = vst [vmem:[#allocation2 + $0x24] sm:$0xf] %v255
      %272 = vst [vmem:[#allocation2 + $0x28] sm:$0xf] %v256
      %273 = vst [vmem:[#allocation2 + $0x2c] sm:$0xf] %v257
      %274 = vst [vmem:[#allocation2 + $0x30] sm:$0xf] %v258
      %275 = vst [vmem:[#allocation2 + $0x34] sm:$0xf] %v259
      %276 = vst [vmem:[#allocation2 + $0x38] sm:$0xf] %v260
      %277 = vst [vmem:[#allocation2 + $0x3c] sm:$0xf] %v261
    $region33: #{tpu_custom_call.1} parent=1 // pred_fallthru
      _
    %v278 = vld [vmem:[#allocation8] sm:$0xf]
    %v279 = vld [vmem:[#allocation8 + $0x4] sm:$0xf]
    %v280 = vld [vmem:[#allocation8 + $0x8] sm:$0xf]
    %v281 = vld [vmem:[#allocation8 + $0xc] sm:$0xf]
    %v282 = vld [vmem:[#allocation8 + $0x10] sm:$0xf]
    %v283 = vld [vmem:[#allocation8 + $0x14] sm:$0xf]
    %v284 = vld [vmem:[#allocation8 + $0x18] sm:$0xf]
    %v285 = vld [vmem:[#allocation8 + $0x1c] sm:$0xf]
    %v286 = vld [vmem:[#allocation8 + $0x20] sm:$0xf]
    %v287 = vld [vmem:[#allocation8 + $0x24] sm:$0xf]
    %v288 = vld [vmem:[#allocation8 + $0x28] sm:$0xf]
    %v289 = vld [vmem:[#allocation8 + $0x2c] sm:$0xf]
    %v290 = vld [vmem:[#allocation8 + $0x30] sm:$0xf]
    %v291 = vld [vmem:[#allocation8 + $0x34] sm:$0xf]
    %v292 = vld [vmem:[#allocation8 + $0x38] sm:$0xf]
    %v293 = vld [vmem:[#allocation8 + $0x3c] sm:$0xf]
    %v294 = vld [vmem:[#allocation2] sm:$0xf]
    %v295 = vld [vmem:[#allocation2 + $0x4] sm:$0xf]
    %v296 = vld [vmem:[#allocation2 + $0x8] sm:$0xf]
    %v297 = vld [vmem:[#allocation2 + $0xc] sm:$0xf]
    %v298 = vld [vmem:[#allocation2 + $0x10] sm:$0xf]
    %v299 = vld [vmem:[#allocation2 + $0x14] sm:$0xf]
    %v300 = vld [vmem:[#allocation2 + $0x18] sm:$0xf]
    %v301 = vld [vmem:[#allocation2 + $0x1c] sm:$0xf]
    %v302 = vld [vmem:[#allocation2 + $0x20] sm:$0xf]
    %v303 = vld [vmem:[#allocation2 + $0x24] sm:$0xf]
    %v304 = vld [vmem:[#allocation2 + $0x28] sm:$0xf]
    %v305 = vld [vmem:[#allocation2 + $0x2c] sm:$0xf]
    %v306 = vld [vmem:[#allocation2 + $0x30] sm:$0xf]
    %v307 = vld [vmem:[#allocation2 + $0x34] sm:$0xf]
    %v308 = vld [vmem:[#allocation2 + $0x38] sm:$0xf]
    %v309 = vld [vmem:[#allocation2 + $0x3c] sm:$0xf]
    %v310 = vld [vmem:[%s3] sm:$0x1]
    %v312 = vperm.slane %v310, 0
    %v330 = vunpack.c.l.b16 %v278
    %v331 = vunpack.c.l.b16 %v279
    %v332 = vunpack.c.l.b16 %v280
    %v333 = vunpack.c.l.b16 %v281
    %v334 = vunpack.c.l.b16 %v282
    %v335 = vunpack.c.l.b16 %v283
    %v336 = vunpack.c.l.b16 %v284
    %v337 = vunpack.c.l.b16 %v285
    %v338 = vunpack.c.l.b16 %v286
    %v339 = vunpack.c.l.b16 %v287
    %v340 = vunpack.c.l.b16 %v288
    %v341 = vunpack.c.l.b16 %v289
    %v342 = vunpack.c.l.b16 %v290
    %v343 = vunpack.c.l.b16 %v291
    %v344 = vunpack.c.l.b16 %v292
    %v345 = vunpack.c.l.b16 %v293
    %v346 = vpack.c.b16 %v331, %v330
    %v347 = vpack.c.b16 %v333, %v332
    %v348 = vpack.c.b16 %v335, %v334
    %v349 = vpack.c.b16 %v337, %v336
    %v350 = vpack.c.b16 %v339, %v338
    %v351 = vpack.c.b16 %v341, %v340
    %v352 = vpack.c.b16 %v343, %v342
    %v353 = vpack.c.b16 %v345, %v344
    %v378 = vunpack.c.l.b16 %v294
    %v379 = vunpack.c.l.b16 %v295
    %v380 = vunpack.c.l.b16 %v296
    %v381 = vunpack.c.l.b16 %v297
    %v382 = vunpack.c.l.b16 %v298
    %v383 = vunpack.c.l.b16 %v299
    %v384 = vunpack.c.l.b16 %v300
    %v385 = vunpack.c.l.b16 %v301
    %v386 = vunpack.c.l.b16 %v302
    %v387 = vunpack.c.l.b16 %v303
    %v388 = vunpack.c.l.b16 %v304
    %v389 = vunpack.c.l.b16 %v305
    %v390 = vunpack.c.l.b16 %v306
    %v391 = vunpack.c.l.b16 %v307
    %v392 = vunpack.c.l.b16 %v308
    %v393 = vunpack.c.l.b16 %v309
    %v394 = vpack.c.b16 %v379, %v378
    %v395 = vpack.c.b16 %v381, %v380
    %v396 = vpack.c.b16 %v383, %v382
    %v397 = vpack.c.b16 %v385, %v384
    %v398 = vpack.c.b16 %v387, %v386
    %v399 = vpack.c.b16 %v389, %v388
    %v400 = vpack.c.b16 %v391, %v390
    %v401 = vpack.c.b16 %v393, %v392
    %410 = vmatpush.bf16.msra.mxu0 %v401
    %411 = vmatpush.bf16.msra.mxu0 %v400
    %412 = vmatpush.bf16.msra.mxu0 %v399
    %413 = vmatpush.bf16.msra.mxu0 %v398
    %414 = vmatpush.bf16.msra.mxu0 %v397
    %415 = vmatpush.bf16.msra.mxu0 %v396
    %416 = vmatpush.bf16.msra.mxu0 %v395
    %417 = vmatpush.bf16.msra.mxu0 %v394
    %418 = vmatmul.bf16.gmra.mxu0 %v346
    %v419 = vpop.f32.mrf.mxu0
    %v420 = vadd.f32 %v312, %v419
    %v421 = vpop.f32.mrf.mxu0
    %v422 = vadd.f32 %v312, %v421
    %423 = vmatmul.bf16.gmra.mxu0 %v347
    %v424 = vpop.f32.mrf.mxu0
    %v425 = vadd.f32 %v312, %v424
    %v426 = vpop.f32.mrf.mxu0
    %v427 = vadd.f32 %v312, %v426
    %428 = vmatmul.bf16.gmra.mxu0 %v348
    %v429 = vpop.f32.mrf.mxu0
    %v430 = vadd.f32 %v312, %v429
    %v431 = vpop.f32.mrf.mxu0
    %v432 = vadd.f32 %v312, %v431
    %433 = vmatmul.bf16.gmra.mxu0 %v349
    %v434 = vpop.f32.mrf.mxu0
    %v435 = vadd.f32 %v312, %v434
    %v436 = vpop.f32.mrf.mxu0
    %v437 = vadd.f32 %v312, %v436
    %438 = vmatmul.bf16.gmra.mxu0 %v350
    %v439 = vpop.f32.mrf.mxu0
    %v440 = vadd.f32 %v312, %v439
    %v441 = vpop.f32.mrf.mxu0
    %v442 = vadd.f32 %v312, %v441
    %443 = vmatmul.bf16.gmra.mxu0 %v351
    %v444 = vpop.f32.mrf.mxu0
    %v445 = vadd.f32 %v312, %v444
    %v446 = vpop.f32.mrf.mxu0
    %v447 = vadd.f32 %v312, %v446
    %448 = vmatmul.bf16.gmra.mxu0 %v352
    %v449 = vpop.f32.mrf.mxu0
    %v450 = vadd.f32 %v312, %v449
    %v451 = vpop.f32.mrf.mxu0
    %v452 = vadd.f32 %v312, %v451
    %453 = vmatmul.bf16.gmra.mxu0 %v353
    %v454 = vpop.f32.mrf.mxu0
    %v455 = vadd.f32 %v312, %v454
    %v456 = vpop.f32.mrf.mxu0
    %v457 = vadd.f32 %v312, %v456
    %458 = vdwg.mxu0
    %459 = vst [vmem:[#allocation9] sm:$0xff] %v420
    %460 = vst [vmem:[#allocation9 + $0x8] sm:$0xff] %v422
    %461 = vst [vmem:[#allocation9 + $0x10] sm:$0xff] %v425
    %462 = vst [vmem:[#allocation9 + $0x18] sm:$0xff] %v427
    %463 = vst [vmem:[#allocation9 + $0x20] sm:$0xff] %v430
    %464 = vst [vmem:[#allocation9 + $0x28] sm:$0xff] %v432
    %465 = vst [vmem:[#allocation9 + $0x30] sm:$0xff] %v435
    %466 = vst [vmem:[#allocation9 + $0x38] sm:$0xff] %v437
    %467 = vst [vmem:[#allocation9 + $0x40] sm:$0xff] %v440
    %468 = vst [vmem:[#allocation9 + $0x48] sm:$0xff] %v442
    %469 = vst [vmem:[#allocation9 + $0x50] sm:$0xff] %v445
    %470 = vst [vmem:[#allocation9 + $0x58] sm:$0xff] %v447
    %471 = vst [vmem:[#allocation9 + $0x60] sm:$0xff] %v450
    %472 = vst [vmem:[#allocation9 + $0x68] sm:$0xff] %v452
    %473 = vst [vmem:[#allocation9 + $0x70] sm:$0xff] %v455
    %474 = vst [vmem:[#allocation9 + $0x78] sm:$0xff] %v457
    // Predicated region
    $region34: #{tpu_custom_call.1} parent=1 // pred_check
      _
    $region35: #{tpu_custom_call.1} parent=1 // pred_check_branch
      %476 = sbr.rel (0) target = $region37
    $region36: #{tpu_custom_call.1} parent=1 // pred_region
      %478 = vsyncadd [#allocation5], 0
      %s479 = sshll.u32 [#allocation9], 4
      %s480 = int_to_ptr.vmem [resolvable:$true] %s479
      %s481 = sshll.u32 %s4, 4
      %s482 = int_to_ptr.hbm [resolvable:$true] %s481
      %487 = dma.vmem_to_hbm [thread:$0]  %s480, 2048, %s482, [#allocation5], 128, 128, 8
    $region37: #{tpu_custom_call.1} parent=1 // pred_fallthru
      _
    // Predicated region
    $region38: #{tpu_custom_call.1} parent=1 // pred_check
      _
    $region39: #{tpu_custom_call.1} parent=1 // pred_check_branch
      %489 = sbr.rel (0) target = $region41
    $region40: #{tpu_custom_call.1} parent=1 // pred_region
      %491 = dma.done [#allocation5], 2048
    $region41: #{tpu_custom_call.1} parent=1 // pred_fallthru
      _
    %492 = vsyncpa [#allocation4], 1
    %493 = vsyncpa [#allocation7], 1
    %494 = vsyncpa [#allocation5], 1

</llo_original>
